<compile_context>
chip_gen: v7x
topology: tpu7x:2x2x1
jax: 0.10.0
libtpu: 0.0.40
codegen_flags: <defaults>
</compile_context>

<pallas_src>
import functools

import jax
import jax.numpy as jnp
from jax import lax
from jax.experimental import pallas as pl
from jax.experimental.pallas import tpu as pltpu

_EPS = 1e-5
_SUBLANE = 8
_LANE = 128


@functools.lru_cache(maxsize=None)
def _vmem_budgets():
    """(vmem_limit_bytes, per-call tile budget) sized per chip generation."""
    cap = None
    try:
        cap = int(pltpu.get_tpu_info().vmem_capacity_bytes)
    except Exception:
        cap = None
    if not cap or cap <= 0:
        cap = 64 * 1024 * 1024                 # conservative: v7x-sized VMEM
    # Leave >=25% headroom for Mosaic internal scratch / spills:
    #   128 MiB (v5e/v6e) -> limit 96 MiB, budget 48 MiB
    #    64 MiB (v7x)     -> limit 48 MiB, budget 24 MiB
    limit = max(32 * 1024 * 1024,
                min(cap - 16 * 1024 * 1024, (cap * 3) // 4))
    return limit, limit // 2


def _round_down(x, m):
    return max(m, (x // m) * m)


def _pick_tiles(n_rows, n_cols, bytes_per_elem, budget):
    """Pick (tr, td) for streaming an (n_rows, n_cols) array.

    tr is a multiple of 8 (or the full row extent), td a multiple of 128 (or
    the full lane extent).  No exact-divisor hunting: partial tail tiles are
    handled by pl.cdiv + Pallas' clipped writeback (plus a lane mask in the
    stats kernel), so tiles stay large for awkward shapes.
    """
    max_elems = max(_SUBLANE * _LANE, budget // max(1, bytes_per_elem))

    if n_cols <= _LANE or n_cols * _SUBLANE <= max_elems:
        td = n_cols                          # whole rows fit -> lane-dense
    else:
        td = _round_down(max_elems // _SUBLANE, _LANE)

    if n_rows <= _SUBLANE:
        tr = n_rows
    else:
        rows_cap = -(-n_rows // _SUBLANE) * _SUBLANE     # round up to 8
        tr = min(_round_down(max_elems // max(1, td), _SUBLANE), rows_cap)
    return tr, td


# ------------------------ pass 1: per-row sum / sumsq -----------------------

def _stats_kernel(x_ref, sum_ref, sq_ref, *, td, d_total, needs_mask):
    # Outputs are resident per-row-tile accumulators (block index depends only
    # on the row-tile axis), so init them when the reduce axis restarts.
    @pl.when(pl.program_id(1) == 0)
    def _():
        sum_ref[...] = jnp.zeros_like(sum_ref)
        sq_ref[...] = jnp.zeros_like(sq_ref)

    x = x_ref[...].astype(jnp.float32)                       # (tr, td)
    if needs_mask:   # static: only emitted when the last lane tile is partial
        col = pl.program_id(1) * td + lax.broadcasted_iota(
            jnp.int32, x.shape, 1)
        x = jnp.where(col < d_total, x, 0.0)
    sum_ref[...] += jnp.sum(x, axis=1, keepdims=True)
    sq_ref[...] += jnp.sum(x * x, axis=1, keepdims=True)


def _row_stats(x2):
    """Per-row sum and sum-of-squares of a 2D array, accumulated in float32."""
    R, D = x2.shape
    limit, budget = _vmem_budgets()
    # Only the input tile is double-buffered (accumulators are resident);
    # budget 2*itemsize for the stream plus ~2 f32 copies of in-kernel temps.
    tr, td = _pick_tiles(R, D, 2 * x2.dtype.itemsize + 8, budget)
    grid = (pl.cdiv(R, tr), pl.cdiv(D, td))
    needs_mask = (D % td) != 0
    kernel = functools.partial(_stats_kernel, td=td, d_total=D,
                               needs_mask=needs_mask)
    return pl.pallas_call(
        kernel,
        out_shape=(jax.ShapeDtypeStruct((R, 1), jnp.float32),
                   jax.ShapeDtypeStruct((R, 1), jnp.float32)),
        grid=grid,
        in_specs=[pl.BlockSpec((tr, td), lambda i, j: (i, j))],
        out_specs=(pl.BlockSpec((tr, 1), lambda i, j: (i, 0)),
                   pl.BlockSpec((tr, 1), lambda i, j: (i, 0))),
        compiler_params=pltpu.CompilerParams(
            dimension_semantics=("parallel", "arbitrary"),
            vmem_limit_bytes=limit),
    )(x2)


# ----------------------- pass 2: y = x * scale + shift ----------------------

def _apply_kernel(x_ref, scale_ref, shift_ref, o_ref):
    x = x_ref[...].astype(jnp.float32)                       # (tr, td)
    # One fused multiply-add per element; (tr, 1) scale/shift broadcast over
    # the lane axis and already fold mean, inv-std and (for bnorm) gamma/beta.
    o_ref[...] = (x * scale_ref[...] + shift_ref[...]).astype(o_ref.dtype)


def _apply_scale_shift(x2, scale, shift):
    R, D = x2.shape
    limit, budget = _vmem_budgets()
    # Double-buffered input + output plus ~2 f32 temporaries per element.
    tr, td = _pick_tiles(R, D, 4 * x2.dtype.itemsize + 8, budget)
    grid = (pl.cdiv(R, tr), pl.cdiv(D, td))
    # TODO(synk): when H*W is small and not a multiple of 128, the output
    # stores are lane-masked; padding H*W to a lane multiple in the wrapper
    # would make them fully lane-dense at the cost of an extra copy.
    return pl.pallas_call(
        _apply_kernel,
        out_shape=jax.ShapeDtypeStruct((R, D), x2.dtype),
        grid=grid,
        in_specs=[pl.BlockSpec((tr, td), lambda i, j: (i, j)),
                  pl.BlockSpec((tr, 1), lambda i, j: (i, 0)),
                  pl.BlockSpec((tr, 1), lambda i, j: (i, 0))],
        out_specs=pl.BlockSpec((tr, td), lambda i, j: (i, j)),
        compiler_params=pltpu.CompilerParams(
            dimension_semantics=("parallel", "parallel"),
            vmem_limit_bytes=limit),
    )(x2, scale, shift)


# ----------------------------- InstanceNorm2d -------------------------------

def _instance_norm(x, eps=_EPS):
    N, C, H, W = x.shape
    R, D = N * C, H * W
    x2 = x.reshape(R, D)                     # free view of contiguous NCHW
    s, sq = _row_stats(x2)                   # (R, 1) f32 each
    mean = s / jnp.float32(D)
    var = jnp.maximum(sq / jnp.float32(D) - mean * mean, 0.0)
    scale = lax.rsqrt(var + eps)
    shift = -mean * scale
    y2 = _apply_scale_shift(x2, scale, shift)
    return y2.reshape(N, C, H, W)


# ------------------------------ BatchNorm2d ---------------------------------

def _batch_norm(x, weight, bias, eps=_EPS):
    N, C, H, W = x.shape
    R, D = N * C, H * W
    x2 = x.reshape(R, D)
    s, sq = _row_stats(x2)                   # per-(n, c) partial stats
    # Tiny XLA epilogue: reduce per-sample partials over N and fold mean,
    # inv-std and the affine gamma/beta into one per-channel scale & shift,
    # then broadcast back to per-row (n, c) vectors for the apply pass.
    s_c = jnp.sum(s.reshape(N, C), axis=0)
    sq_c = jnp.sum(sq.reshape(N, C), axis=0)
    count = jnp.float32(N * D)
    mean = s_c / count
    var = jnp.maximum(sq_c / count - mean * mean, 0.0)   # biased variance
    scale_c = lax.rsqrt(var + eps) * weight.astype(jnp.float32)
    shift_c = bias.astype(jnp.float32) - mean * scale_c
    scale = jnp.broadcast_to(scale_c[None, :], (N, C)).reshape(R, 1)
    shift = jnp.broadcast_to(shift_c[None, :], (N, C)).reshape(R, 1)
    y2 = _apply_scale_shift(x2, scale, shift)
    return y2.reshape(N, C, H, W)


# --------------------------------- Module -----------------------------------

class Norm2d:
    """JAX/Pallas port of topo2vec Norm2d (forward pass, training-mode stats)."""

    def __init__(self, nch, norm_mode):
        assert norm_mode in ("bnorm", "inorm")
        self.nch = nch
        self.norm_mode = norm_mode
        self.eps = _EPS
        if norm_mode == "bnorm":
            # nn.BatchNorm2d default affine init (weight=1, bias=0); folded
            # into the per-channel scale/shift so non-default values are free.
            self.weight = jnp.ones((nch,), jnp.float32)
            self.bias = jnp.zeros((nch,), jnp.float32)
        else:
            # nn.InstanceNorm2d default: affine=False — no parameters.
            self.weight = None
            self.bias = None

    def __call__(self, x):
        N, C, H, W = x.shape
        assert C == self.nch
        if self.norm_mode == "bnorm":
            # TODO(synk): training-mode batch statistics only; no
            # running_mean/running_var (eval-mode) path is implemented.
            return _batch_norm(x, self.weight, self.bias, self.eps)
        return _instance_norm(x, self.eps)


# -------------------------------- Self-test ---------------------------------

def _reference(x, norm_mode, eps=_EPS):
    if norm_mode == "bnorm":
        mean = jnp.mean(x, axis=(0, 2, 3), keepdims=True)
        var = jnp.mean((x - mean) ** 2, axis=(0, 2, 3), keepdims=True)
    else:
        mean = jnp.mean(x, axis=(2, 3), keepdims=True)
        var = jnp.mean((x - mean) ** 2, axis=(2, 3), keepdims=True)
    return (x - mean) / jnp.sqrt(var + eps)


if __name__ == "__main__":
    root = jax.random.PRNGKey(0)
    ok = True
    # Small aligned shape plus an odd/ragged one to exercise partial tiles.
    for idx, (N, C, H, W) in enumerate(((2, 4, 16, 16), (2, 3, 12, 10))):
        x = jax.random.normal(jax.random.fold_in(root, idx),
                              (N, C, H, W), dtype=jnp.float32)
        for mode in ("bnorm", "inorm"):
            mod = Norm2d(C, mode)
            y = jax.block_until_ready(mod(x))
            y_ref = _reference(x, mode)
            err = float(jnp.max(jnp.abs(y - y_ref)))
            ok = ok and (err < 1e-4) and (y.shape == x.shape) \
                 and (y.dtype == x.dtype)

    if ok:
        print("KERNEL_OK")
</pallas_src>

<mosaic_0001>
module attributes {stable_mosaic.version = 11 : i64} {
  func.func @_stats_kernel(%arg0: i32, %arg1: i32, %arg2: memref<8x256xf32, #tpu.memory_space<vmem>>, %arg3: memref<8x1xf32, #tpu.memory_space<vmem>>, %arg4: memref<8x1xf32, #tpu.memory_space<vmem>>) attributes {dimension_semantics = [#tpu.dimension_semantics<parallel>, #tpu.dimension_semantics<arbitrary>], iteration_bounds = array<i64: 1, 1>, scalar_prefetch = 0 : i64, scratch_operands = 0 : i64, tpu.core_type = #tpu.core_type<tc>, window_params = [{transform_indices = @transform_0, window_bounds = array<i64: 8, 256>}, {transform_indices = @transform_1, window_bounds = array<i64: 8, 1>}, {transform_indices = @transform_2, window_bounds = array<i64: 8, 1>}]} {
    %c0_i32 = arith.constant 0 : i32
    %0 = arith.cmpi eq, %arg1, %c0_i32 : i32
    %1 = arith.extui %0 : i1 to i32
    %c0_i32_0 = arith.constant 0 : i32
    %2 = arith.cmpi ne, %1, %c0_i32_0 : i32
    scf.if %2 {
      %cst_11 = arith.constant 0.000000e+00 : f32
      %15 = vector.broadcast %cst_11 : f32 to vector<8x1xf32>
      %c0_12 = arith.constant 0 : index
      %c0_13 = arith.constant 0 : index
      %16 = vector.load %arg3[%c0_12, %c0_13] : memref<8x1xf32, #tpu.memory_space<vmem>>, vector<8x1xf32>
      tpu.vector_store %arg3[%c0_12, %c0_13], %15 {strides = array<i32>} : memref<8x1xf32, #tpu.memory_space<vmem>>, vector<8x1xf32>,
      %cst_14 = arith.constant 0.000000e+00 : f32
      %17 = vector.broadcast %cst_14 : f32 to vector<8x1xf32>
      %c0_15 = arith.constant 0 : index
      %c0_16 = arith.constant 0 : index
      %18 = vector.load %arg4[%c0_15, %c0_16] : memref<8x1xf32, #tpu.memory_space<vmem>>, vector<8x1xf32>
      tpu.vector_store %arg4[%c0_15, %c0_16], %17 {strides = array<i32>} : memref<8x1xf32, #tpu.memory_space<vmem>>, vector<8x1xf32>,
    } else {
    }
    %c0 = arith.constant 0 : index
    %c0_1 = arith.constant 0 : index
    %3 = vector.load %arg2[%c0, %c0_1] : memref<8x256xf32, #tpu.memory_space<vmem>>, vector<8x256xf32>
    %c0_2 = arith.constant 0 : index
    %c0_3 = arith.constant 0 : index
    %4 = vector.load %arg3[%c0_2, %c0_3] : memref<8x1xf32, #tpu.memory_space<vmem>>, vector<8x1xf32>
    %cst = arith.constant dense<0.000000e+00> : vector<8xf32>
    %5 = vector.multi_reduction <add>, %3, %cst [1] : vector<8x256xf32> to vector<8xf32>
    %6 = vector.shape_cast %5 : vector<8xf32> to vector<8x1xf32>
    %7 = arith.addf %4, %6 : vector<8x1xf32>
    %c0_4 = arith.constant 0 : index
    %c0_5 = arith.constant 0 : index
    %8 = vector.load %arg3[%c0_4, %c0_5] : memref<8x1xf32, #tpu.memory_space<vmem>>, vector<8x1xf32>
    tpu.vector_store %arg3[%c0_4, %c0_5], %7 {strides = array<i32>} : memref<8x1xf32, #tpu.memory_space<vmem>>, vector<8x1xf32>,
    %c0_6 = arith.constant 0 : index
    %c0_7 = arith.constant 0 : index
    %9 = vector.load %arg4[%c0_6, %c0_7] : memref<8x1xf32, #tpu.memory_space<vmem>>, vector<8x1xf32>
    %10 = arith.mulf %3, %3 : vector<8x256xf32>
    %cst_8 = arith.constant dense<0.000000e+00> : vector<8xf32>
    %11 = vector.multi_reduction <add>, %10, %cst_8 [1] : vector<8x256xf32> to vector<8xf32>
    %12 = vector.shape_cast %11 : vector<8xf32> to vector<8x1xf32>
    %13 = arith.addf %9, %12 : vector<8x1xf32>
    %c0_9 = arith.constant 0 : index
    %c0_10 = arith.constant 0 : index
    %14 = vector.load %arg4[%c0_9, %c0_10] : memref<8x1xf32, #tpu.memory_space<vmem>>, vector<8x1xf32>
    tpu.vector_store %arg4[%c0_9, %c0_10], %13 {strides = array<i32>} : memref<8x1xf32, #tpu.memory_space<vmem>>, vector<8x1xf32>,
    return
  }
  func.func @transform_0(%arg0: i32, %arg1: i32) -> (i32, i32) {
    %c0_i32 = arith.constant 0 : i32
    return %arg0, %arg1 : i32, i32
  }
  func.func @transform_1(%arg0: i32, %arg1: i32) -> (i32, i32) {
    %c0_i32 = arith.constant 0 : i32
    %c0_i32_0 = arith.constant 0 : i32
    return %arg0, %c0_i32 : i32, i32
  }
  func.func @transform_2(%arg0: i32, %arg1: i32) -> (i32, i32) {
    %c0_i32 = arith.constant 0 : i32
    %c0_i32_0 = arith.constant 0 : i32
    return %arg0, %c0_i32 : i32, i32
  }
}

</mosaic_0001>

<llo_original>
// kernel: tpu_custom_call.1
$region0: #{tpu_custom_call.1}
  #allocation0 [shape = 'u32[]', space=smem, size = 0x4, offset = 0x4, fixed_abs, tag = 'smem constant byte address 0x4 - core index']
  #allocation1 [shape = 'u32[144,128]{1,0:T(1,128)}', space=vmem, size = 0x12000, scoped, tag = 'internal scratch']
  %s0 = inlined_call_operand.hbm [shape: f32[8,256], index: 0, kind: input, shape index: {}]
  %s1 = inlined_call_operand.vmem [shape: f32[8,1], index: 1, kind: output, shape index: {0}]
  %s2 = inlined_call_operand.vmem [shape: f32[8,1], index: 2, kind: output, shape index: {1}]
  %3 = xla_tuple %s1, %s2
  %s4 = sld [smem:[#allocation0]]
  $region30: #{tpu_custom_call.1} parent=0
    _
  %s6 = ssub.s32 1, %s4
  %s7 = scalar_select 0, %s6, %s4
  $region1: #{tpu_custom_call.1} parent=0
    #allocation2 [shape = 'u8[8192]{0}', space=vmem, size = 0x2000, scoped, tag = 'input window, operand 0, single buffered']
    #allocation3 [shape = 's32[1]{0}', space=sflag, size = 0x4, scoped, tag = 'scoped memory for tpu_custom_call.1']
    %8 = vsyncpa [#allocation3], 0
    // Predicated region
    $region2: #{tpu_custom_call.1} parent=1 // pred_check
      _
    $region3: #{tpu_custom_call.1} parent=1 // pred_check_branch
      %10 = sbr.rel (0) target = $region5
    $region4: #{tpu_custom_call.1} parent=1 // pred_region
      %s12 = ssub.s32 256, 256
      %13 = vsyncadd [#allocation3], %s12
      %s15 = sshll.u32 [#allocation2], 4
      %s16 = int_to_ptr.vmem [resolvable:$true] %s15
      %18 = dma.hbm_to_vmem [thread:$0]  %s0, 256, %s16, [#allocation3]
    $region5: #{tpu_custom_call.1} parent=1 // pred_fallthru
      _
    // Predicated region
    $region6: #{tpu_custom_call.1} parent=1 // pred_check
      _
    $region7: #{tpu_custom_call.1} parent=1 // pred_check_branch
      %20 = sbr.rel (0) target = $region9
    $region8: #{tpu_custom_call.1} parent=1 // pred_region
      %21 = dma.done [#allocation3], 256
    $region9: #{tpu_custom_call.1} parent=1 // pred_fallthru
      _
    %p22 = scmp.eq.s32.totalorder 0, 0
    // Predicated region
    $region10: #{tpu_custom_call.1} parent=1 // pred_check
      %p23 = pneg %p22
    $region11: #{tpu_custom_call.1} parent=1 // pred_check_branch
      %25 = sbr.rel (%p23) target = $region13
    $region12: #{tpu_custom_call.1} parent=1 // pred_region
      %vm26 = vcmask 7168
      %27 = vst.msk [vmem:[%s1] sm:$0xff] %vm26, 0.0
      %28 = vst.msk [vmem:[%s2] sm:$0xff] %vm26, 0.0
    $region13: #{tpu_custom_call.1} parent=1 // pred_fallthru
      _
    %v29 = vld [vmem:[#allocation2] sm:$0xff]
    %v30 = vld [vmem:[#allocation2 + $0x8] sm:$0xff]
    %v31 = vld [vmem:[%s1] sm:$0xff]
    %v32 = vadd.f32 %v29, %v30
    %33 = vadd.xlane.f32.xlu0 %v32
    %v34 = vpop.xlane.xlu0 %33
    %v35 = vadd.f32 %v31, %v34
    %vm36 = vcmask 7168
    %37 = vst.msk [vmem:[%s1] sm:$0xff] %vm36, %v35
    %v38 = vld [vmem:[%s2] sm:$0xff]
    %v39 = vmul.f32 %v29, %v29
    %v40 = vmul.f32 %v30, %v30
    %v41 = vadd.f32 %v39, %v40
    %42 = vadd.xlane.f32.xlu0 %v41
    %v43 = vpop.xlane.xlu0 %42
    %v44 = vadd.f32 %v38, %v43
    %45 = vst.msk [vmem:[%s2] sm:$0xff] %vm36, %v44
    // Predicated region
    $region14: #{tpu_custom_call.1} parent=1 // pred_check
      _
    $region15: #{tpu_custom_call.1} parent=1 // pred_check_branch
      %47 = sbr.rel (0) target = $region17
    $region16: #{tpu_custom_call.1} parent=1 // pred_region
      _
    $region17: #{tpu_custom_call.1} parent=1 // pred_fallthru
      _
    // Predicated region
    $region18: #{tpu_custom_call.1} parent=1 // pred_check
      _
    $region19: #{tpu_custom_call.1} parent=1 // pred_check_branch
      %49 = sbr.rel (0) target = $region21
    $region20: #{tpu_custom_call.1} parent=1 // pred_region
      _
    $region21: #{tpu_custom_call.1} parent=1 // pred_fallthru
      _
    // Predicated region
    $region22: #{tpu_custom_call.1} parent=1 // pred_check
      _
    $region23: #{tpu_custom_call.1} parent=1 // pred_check_branch
      %51 = sbr.rel (0) target = $region25
    $region24: #{tpu_custom_call.1} parent=1 // pred_region
      _
    $region25: #{tpu_custom_call.1} parent=1 // pred_fallthru
      _
    // Predicated region
    $region26: #{tpu_custom_call.1} parent=1 // pred_check
      _
    $region27: #{tpu_custom_call.1} parent=1 // pred_check_branch
      %53 = sbr.rel (0) target = $region29
    $region28: #{tpu_custom_call.1} parent=1 // pred_region
      _
    $region29: #{tpu_custom_call.1} parent=1 // pred_fallthru
      _
    %54 = vsyncpa [#allocation3], 1

</llo_original>
